<compile_context>
chip_gen: v6e
topology: v6e:2x2x1
jax: 0.10.0
libtpu: 0.0.40
codegen_flags: <defaults>
</compile_context>

<pallas_src>
import functools

import jax
import jax.numpy as jnp
from jax.experimental import pallas as pl
from jax.experimental.pallas import tpu as pltpu


def _classification_kernel(x_ref, w1_ref, w23_ref, b_ref, wct_ref, bc_ref,
                           out_ref, acc_ref, *, f_len, tile_f, need_mask):
    """One grid step = (batch tile bb, frame tile t).

    x_ref   : [TILE_B, TILE_F, idim]   frame tile for TILE_B batches
    w1_ref  : [idim, H]
    w23_ref : [2, H, H]                stacked hidden weights (layers 2, 3)
    b_ref   : [3, H]                   stacked hidden biases
    wct_ref : [odim, H]                classifier weight, transposed
    bc_ref  : [1, odim]                classifier bias
    out_ref : [TILE_B, odim]
    acc_ref : [TILE_B, H] VMEM scratch (per-batch hidden sums over frames)
    """
    t = pl.program_id(1)

    @pl.when(t == 0)
    def _init():
        acc_ref[...] = jnp.zeros_like(acc_ref)

    tile_b = x_ref.shape[0]
    idim = x_ref.shape[2]
    hidden = w1_ref.shape[1]

    # Flatten (TILE_B, TILE_F) frames into rows for the MXU matmuls
    # (same row-major order as the PyTorch reshape(-1, idim)).
    x = x_ref[...].reshape(tile_b * tile_f, idim)
    b = b_ref[...]

    h = jnp.dot(x, w1_ref[...], preferred_element_type=jnp.float32) + b[0:1, :]
    h = jnp.maximum(h, 0.0)
    h = jnp.dot(h, w23_ref[0], preferred_element_type=jnp.float32) + b[1:2, :]
    h = jnp.maximum(h, 0.0)
    h = jnp.dot(h, w23_ref[1], preferred_element_type=jnp.float32) + b[2:3, :]
    h = jnp.maximum(h, 0.0)

    # Per-batch partial sum over this frame tile (VPU reduction, no pooling
    # matmul and no materialized pooling matrix).
    h3 = h.reshape(tile_b, tile_f, hidden)
    if need_mask:  # last frame tile may contain padded (zero) frames
        frame_ids = t * tile_f + jax.lax.broadcasted_iota(
            jnp.int32, (1, tile_f, 1), 1)
        h3 = jnp.where(frame_ids < f_len, h3, 0.0)
    acc_ref[...] += jnp.sum(h3, axis=1)

    @pl.when(t == pl.num_programs(1) - 1)
    def _finalize():
        pooled = acc_ref[...] * (1.0 / f_len)          # [TILE_B, H]
        wct = wct_ref[...]                             # [odim, H]
        odim = wct_ref.shape[0]
        if odim == 1:
            # VPU classifier: broadcast-multiply + lane reduce (MXU not worth it).
            logits = jnp.sum(pooled * wct, axis=-1, keepdims=True)
        else:
            logits = jnp.sum(pooled[:, None, :] * wct[None, :, :], axis=-1)
        out_ref[...] = jax.nn.sigmoid(logits + bc_ref[...])


def classification_forward(audio_feat, params):
    """audio_feat: [BS, f_len, idim] float32 -> [BS, odim] float32."""
    BS, f_len, idim = audio_feat.shape
    w1, b1, w2, b2, w3, b3, wc, bc = params
    hidden = w1.shape[1]
    odim = wc.shape[1]

    # --- tile selection -----------------------------------------------------
    # Batch tile: full BS when small, else 8 (sublane multiple) so the batch
    # grid axis can be sharded "parallel" across two TensorCores.
    tile_b = BS if BS <= 8 else 8
    # Frame tile: bound the per-tile activation footprint
    # (tile_b * tile_f * max(idim, hidden) f32) to ~4 MiB so double-buffered
    # inputs + MXU intermediates stay well inside scoped VMEM.
    row_bytes = 4 * max(idim, hidden)
    budget_rows = max(8, (4 * 1024 * 1024) // (row_bytes * tile_b))
    budget_rows = (budget_rows // 8) * 8
    tile_f = f_len if f_len <= budget_rows else min(512, budget_rows)

    f_pad = pl.cdiv(f_len, tile_f) * tile_f
    b_pad = pl.cdiv(BS, tile_b) * tile_b
    need_mask = f_pad != f_len

    x = audio_feat.astype(jnp.float32)
    if f_pad != f_len or b_pad != BS:
        x = jnp.pad(x, ((0, b_pad - BS), (0, f_pad - f_len), (0, 0)))

    # --- param packing (fewer tiny DMA descriptors) ---------------------------
    w23 = jnp.stack([w2, w3], axis=0)                      # [2, H, H]
    bstack = jnp.concatenate([b1, b2, b3], axis=0)         # [3, H]
    wct = wc.T                                             # [odim, H]

    grid = (b_pad // tile_b, f_pad // tile_f)

    kernel = functools.partial(
        _classification_kernel, f_len=f_len, tile_f=tile_f, need_mask=need_mask)

    # --- cost estimate (helps XLA schedule around this tiny custom call) -----
    n_rows = BS * f_len
    flops = (2 * n_rows * (idim * hidden + 2 * hidden * hidden)  # 3 matmuls
             + n_rows * hidden                                   # mean accumulate
             + 2 * BS * hidden * odim)                           # classifier
    bytes_accessed = 4 * int(x.size + w1.size + w23.size + bstack.size
                             + wct.size + bc.size + b_pad * odim)
    cost = pl.CostEstimate(flops=int(flops),
                           transcendentals=int(BS * odim),
                           bytes_accessed=bytes_accessed)

    out = pl.pallas_call(
        kernel,
        out_shape=jax.ShapeDtypeStruct((b_pad, odim), jnp.float32),
        grid_spec=pltpu.PrefetchScalarGridSpec(
            num_scalar_prefetch=0,
            grid=grid,
            in_specs=[
                pl.BlockSpec((tile_b, tile_f, idim), lambda bb, t: (bb, t, 0)),
                pl.BlockSpec((idim, hidden), lambda bb, t: (0, 0)),
                pl.BlockSpec((2, hidden, hidden), lambda bb, t: (0, 0, 0)),
                pl.BlockSpec((3, hidden), lambda bb, t: (0, 0)),
                pl.BlockSpec((odim, hidden), lambda bb, t: (0, 0)),
                pl.BlockSpec((1, odim), lambda bb, t: (0, 0)),
            ],
            out_specs=pl.BlockSpec((tile_b, odim), lambda bb, t: (bb, 0)),
            scratch_shapes=[pltpu.VMEM((tile_b, hidden), jnp.float32)],
        ),
        compiler_params=pltpu.CompilerParams(
            dimension_semantics=("parallel", "arbitrary"),
            vmem_limit_bytes=32 * 1024 * 1024,
        ),
        cost_estimate=cost,
    )(x, w1, w23, bstack, wct, bc)

    return out[:BS]


def init_params(key, idim=39, odim=1, hidden_dim=32):
    """Deterministic synthetic parameters (PyTorch-Linear init, stored
    transposed so the kernel computes x @ W + b). Biases kept 2D [1, D]."""
    ks = jax.random.split(key, 8)

    def linear(kw, kb, fan_in, fan_out):
        bound = 1.0 / jnp.sqrt(fan_in)
        w = jax.random.uniform(kw, (fan_in, fan_out), jnp.float32, -bound, bound)
        b = jax.random.uniform(kb, (1, fan_out), jnp.float32, -bound, bound)
        return w, b

    w1, b1 = linear(ks[0], ks[1], idim, hidden_dim)
    w2, b2 = linear(ks[2], ks[3], hidden_dim, hidden_dim)
    w3, b3 = linear(ks[4], ks[5], hidden_dim, hidden_dim)
    wc, bc = linear(ks[6], ks[7], hidden_dim, odim)
    return (w1, b1, w2, b2, w3, b3, wc, bc)


def reference_forward(audio_feat, params):
    """Pure-JAX reference mirroring the PyTorch module."""
    w1, b1, w2, b2, w3, b3, wc, bc = params
    BS, f_len, idim = audio_feat.shape
    x = audio_feat.reshape(-1, idim)
    x = jnp.maximum(x @ w1 + b1, 0.0)
    x = jnp.maximum(x @ w2 + b2, 0.0)
    x = jnp.maximum(x @ w3 + b3, 0.0)
    x = x.reshape(BS, f_len, -1).mean(axis=1)
    return jax.nn.sigmoid(x @ wc + bc)


if __name__ == "__main__":
    BS, f_len, idim, hidden_dim, odim = 2, 8, 39, 32, 1

    key = jax.random.PRNGKey(0)
    k_x, k_p = jax.random.split(key)
    audio_feat = jax.random.normal(k_x, (BS, f_len, idim), dtype=jnp.float32)
    params = init_params(k_p, idim=idim, odim=odim, hidden_dim=hidden_dim)

    out = classification_forward(audio_feat, params)
    out = jax.block_until_ready(out)

    ref = reference_forward(audio_feat, params)
    assert out.shape == (BS, odim), out.shape
    assert jnp.allclose(out, ref, atol=1e-5, rtol=1e-5), (out, ref)

    print("KERNEL_OK")
</pallas_src>

<mosaic_0001>
module attributes {stable_mosaic.version = 11 : i64} {
  func.func @_classification_kernel(%arg0: i32, %arg1: i32, %arg2: memref<2x8x39xf32, #tpu.memory_space<vmem>>, %arg3: memref<39x32xf32, #tpu.memory_space<vmem>>, %arg4: memref<2x32x32xf32, #tpu.memory_space<vmem>>, %arg5: memref<3x32xf32, #tpu.memory_space<vmem>>, %arg6: memref<1x32xf32, #tpu.memory_space<vmem>>, %arg7: memref<1x1xf32, #tpu.memory_space<vmem>>, %arg8: memref<2x1xf32, #tpu.memory_space<vmem>>, %arg9: memref<2x32xf32, #tpu.memory_space<vmem>>) attributes {dimension_semantics = [#tpu.dimension_semantics<parallel>, #tpu.dimension_semantics<arbitrary>], iteration_bounds = array<i64: 1, 1>, scalar_prefetch = 0 : i64, scratch_operands = 1 : i64, tpu.core_type = #tpu.core_type<tc>, window_params = [{transform_indices = @transform_0, window_bounds = array<i64: 2, 8, 39>}, {pipeline_mode = #tpu.pipeline_mode<synchronous>, transform_indices = @transform_1, window_bounds = array<i64: 39, 32>}, {pipeline_mode = #tpu.pipeline_mode<synchronous>, transform_indices = @transform_2, window_bounds = array<i64: 2, 32, 32>}, {pipeline_mode = #tpu.pipeline_mode<synchronous>, transform_indices = @transform_3, window_bounds = array<i64: 3, 32>}, {pipeline_mode = #tpu.pipeline_mode<synchronous>, transform_indices = @transform_4, window_bounds = array<i64: 1, 32>}, {pipeline_mode = #tpu.pipeline_mode<synchronous>, transform_indices = @transform_5, window_bounds = array<i64: 1, 1>}, {transform_indices = @transform_6, window_bounds = array<i64: 2, 1>}]} {
    %c0_i32 = arith.constant 0 : i32
    %0 = arith.cmpi eq, %arg1, %c0_i32 : i32
    %1 = arith.extui %0 : i1 to i32
    %c0_i32_0 = arith.constant 0 : i32
    %2 = arith.cmpi ne, %1, %c0_i32_0 : i32
    scf.if %2 {
      %cst_24 = arith.constant 0.000000e+00 : f32
      %37 = vector.broadcast %cst_24 : f32 to vector<2x32xf32>
      %c0_25 = arith.constant 0 : index
      %c0_26 = arith.constant 0 : index
      %38 = vector.load %arg9[%c0_25, %c0_26] : memref<2x32xf32, #tpu.memory_space<vmem>>, vector<2x32xf32>
      tpu.vector_store %arg9[%c0_25, %c0_26], %37 {strides = array<i32>} : memref<2x32xf32, #tpu.memory_space<vmem>>, vector<2x32xf32>,
    } else {
    }
    %c0 = arith.constant 0 : index
    %c0_1 = arith.constant 0 : index
    %c0_2 = arith.constant 0 : index
    %3 = vector.load %arg2[%c0, %c0_1, %c0_2] : memref<2x8x39xf32, #tpu.memory_space<vmem>>, vector<2x8x39xf32>
    %4 = vector.shape_cast %3 : vector<2x8x39xf32> to vector<16x39xf32>
    %c0_3 = arith.constant 0 : index
    %c0_4 = arith.constant 0 : index
    %5 = vector.load %arg5[%c0_3, %c0_4] : memref<3x32xf32, #tpu.memory_space<vmem>>, vector<3x32xf32>
    %c0_5 = arith.constant 0 : index
    %c0_6 = arith.constant 0 : index
    %6 = vector.load %arg3[%c0_5, %c0_6] : memref<39x32xf32, #tpu.memory_space<vmem>>, vector<39x32xf32>
    %cst = arith.constant dense<0.000000e+00> : vector<16x32xf32>
    %7 = tpu.matmul %4, %6, %cst {dimension_numbers = #tpu.dot_dimension_numbers<[1], [0], [0], [1], [0, 0, 1, 1], [], []>} : vector<16x39xf32>, vector<39x32xf32>, vector<16x32xf32> -> vector<16x32xf32>
    %8 = vector.extract_strided_slice %5 {offsets = [0, 0], sizes = [1, 32], strides = [1, 1]} : vector<3x32xf32> to vector<1x32xf32>
    %9 = vector.broadcast %8 : vector<1x32xf32> to vector<16x32xf32>
    %10 = arith.addf %7, %9 : vector<16x32xf32>
    %cst_7 = arith.constant 0.000000e+00 : f32
    %11 = vector.broadcast %cst_7 : f32 to vector<16x32xf32>
    %12 = arith.maximumf %10, %11 : vector<16x32xf32>
    %c0_8 = arith.constant 0 : index
    %c0_9 = arith.constant 0 : index
    %c0_10 = arith.constant 0 : index
    %13 = vector.load %arg4[%c0_8, %c0_9, %c0_10] : memref<2x32x32xf32, #tpu.memory_space<vmem>>, vector<1x32x32xf32>
    %14 = vector.shape_cast %13 : vector<1x32x32xf32> to vector<32x32xf32>
    %cst_11 = arith.constant dense<0.000000e+00> : vector<16x32xf32>
    %15 = tpu.matmul %12, %14, %cst_11 {dimension_numbers = #tpu.dot_dimension_numbers<[1], [0], [0], [1], [0, 0, 1, 1], [], []>} : vector<16x32xf32>, vector<32x32xf32>, vector<16x32xf32> -> vector<16x32xf32>
    %16 = vector.extract_strided_slice %5 {offsets = [1, 0], sizes = [1, 32], strides = [1, 1]} : vector<3x32xf32> to vector<1x32xf32>
    %17 = vector.broadcast %16 : vector<1x32xf32> to vector<16x32xf32>
    %18 = arith.addf %15, %17 : vector<16x32xf32>
    %cst_12 = arith.constant 0.000000e+00 : f32
    %19 = vector.broadcast %cst_12 : f32 to vector<16x32xf32>
    %20 = arith.maximumf %18, %19 : vector<16x32xf32>
    %c1 = arith.constant 1 : index
    %c0_13 = arith.constant 0 : index
    %c0_14 = arith.constant 0 : index
    %21 = vector.load %arg4[%c1, %c0_13, %c0_14] : memref<2x32x32xf32, #tpu.memory_space<vmem>>, vector<1x32x32xf32>
    %22 = vector.shape_cast %21 : vector<1x32x32xf32> to vector<32x32xf32>
    %cst_15 = arith.constant dense<0.000000e+00> : vector<16x32xf32>
    %23 = tpu.matmul %20, %22, %cst_15 {dimension_numbers = #tpu.dot_dimension_numbers<[1], [0], [0], [1], [0, 0, 1, 1], [], []>} : vector<16x32xf32>, vector<32x32xf32>, vector<16x32xf32> -> vector<16x32xf32>
    %24 = vector.extract_strided_slice %5 {offsets = [2, 0], sizes = [1, 32], strides = [1, 1]} : vector<3x32xf32> to vector<1x32xf32>
    %25 = vector.broadcast %24 : vector<1x32xf32> to vector<16x32xf32>
    %26 = arith.addf %23, %25 : vector<16x32xf32>
    %cst_16 = arith.constant 0.000000e+00 : f32
    %27 = vector.broadcast %cst_16 : f32 to vector<16x32xf32>
    %28 = arith.maximumf %26, %27 : vector<16x32xf32>
    %29 = vector.shape_cast %28 : vector<16x32xf32> to vector<2x8x32xf32>
    %c0_17 = arith.constant 0 : index
    %c0_18 = arith.constant 0 : index
    %30 = vector.load %arg9[%c0_17, %c0_18] : memref<2x32xf32, #tpu.memory_space<vmem>>, vector<2x32xf32>
    %cst_19 = arith.constant dense<0.000000e+00> : vector<2x32xf32>
    %31 = vector.multi_reduction <add>, %29, %cst_19 [1] : vector<2x8x32xf32> to vector<2x32xf32>
    %32 = arith.addf %30, %31 : vector<2x32xf32>
    %c0_20 = arith.constant 0 : index
    %c0_21 = arith.constant 0 : index
    %33 = vector.load %arg9[%c0_20, %c0_21] : memref<2x32xf32, #tpu.memory_space<vmem>>, vector<2x32xf32>
    tpu.vector_store %arg9[%c0_20, %c0_21], %32 {strides = array<i32>} : memref<2x32xf32, #tpu.memory_space<vmem>>, vector<2x32xf32>,
    %c0_i32_22 = arith.constant 0 : i32
    %34 = arith.cmpi eq, %arg1, %c0_i32_22 : i32
    %35 = arith.extui %34 : i1 to i32
    %c0_i32_23 = arith.constant 0 : i32
    %36 = arith.cmpi ne, %35, %c0_i32_23 : i32
    scf.if %36 {
      %c0_24 = arith.constant 0 : index
      %c0_25 = arith.constant 0 : index
      %37 = vector.load %arg9[%c0_24, %c0_25] : memref<2x32xf32, #tpu.memory_space<vmem>>, vector<2x32xf32>
      %cst_26 = arith.constant 1.250000e-01 : f32
      %38 = vector.broadcast %cst_26 : f32 to vector<2x32xf32>
      %39 = arith.mulf %37, %38 : vector<2x32xf32>
      %c0_27 = arith.constant 0 : index
      %c0_28 = arith.constant 0 : index
      %40 = vector.load %arg6[%c0_27, %c0_28] : memref<1x32xf32, #tpu.memory_space<vmem>>, vector<1x32xf32>
      %41 = vector.broadcast %40 : vector<1x32xf32> to vector<2x32xf32>
      %42 = arith.mulf %39, %41 : vector<2x32xf32>
      %cst_29 = arith.constant dense<0.000000e+00> : vector<2xf32>
      %43 = vector.multi_reduction <add>, %42, %cst_29 [1] : vector<2x32xf32> to vector<2xf32>
      %44 = vector.shape_cast %43 : vector<2xf32> to vector<2x1xf32>
      %c0_30 = arith.constant 0 : index
      %c0_31 = arith.constant 0 : index
      %45 = vector.load %arg7[%c0_30, %c0_31] : memref<1x1xf32, #tpu.memory_space<vmem>>, vector<1x1xf32>
      %46 = vector.broadcast %45 : vector<1x1xf32> to vector<2x1xf32>
      %47 = arith.addf %44, %46 : vector<2x1xf32>
      %48 = arith.negf %47 : vector<2x1xf32>
      %49 = math.exp %48 : vector<2x1xf32>
      %cst_32 = arith.constant 1.000000e+00 : f32
      %50 = vector.broadcast %cst_32 : f32 to vector<2x1xf32>
      %51 = arith.addf %50, %49 : vector<2x1xf32>
      %52 = arith.divf %50, %51 : vector<2x1xf32>
      %c0_33 = arith.constant 0 : index
      %c0_34 = arith.constant 0 : index
      %53 = vector.load %arg8[%c0_33, %c0_34] : memref<2x1xf32, #tpu.memory_space<vmem>>, vector<2x1xf32>
      tpu.vector_store %arg8[%c0_33, %c0_34], %52 {strides = array<i32>} : memref<2x1xf32, #tpu.memory_space<vmem>>, vector<2x1xf32>,
    } else {
    }
    return
  }
  func.func @transform_0(%arg0: i32, %arg1: i32) -> (i32, i32, i32) {
    %c0_i32 = arith.constant 0 : i32
    %c0_i32_0 = arith.constant 0 : i32
    return %arg0, %arg1, %c0_i32 : i32, i32, i32
  }
  func.func @transform_1(%arg0: i32, %arg1: i32) -> (i32, i32) {
    %c0_i32 = arith.constant 0 : i32
    %c0_i32_0 = arith.constant 0 : i32
    %c0_i32_1 = arith.constant 0 : i32
    return %c0_i32, %c0_i32_0 : i32, i32
  }
  func.func @transform_2(%arg0: i32, %arg1: i32) -> (i32, i32, i32) {
    %c0_i32 = arith.constant 0 : i32
    %c0_i32_0 = arith.constant 0 : i32
    %c0_i32_1 = arith.constant 0 : i32
    %c0_i32_2 = arith.constant 0 : i32
    return %c0_i32, %c0_i32_0, %c0_i32_1 : i32, i32, i32
  }
  func.func @transform_3(%arg0: i32, %arg1: i32) -> (i32, i32) {
    %c0_i32 = arith.constant 0 : i32
    %c0_i32_0 = arith.constant 0 : i32
    %c0_i32_1 = arith.constant 0 : i32
    return %c0_i32, %c0_i32_0 : i32, i32
  }
  func.func @transform_4(%arg0: i32, %arg1: i32) -> (i32, i32) {
    %c0_i32 = arith.constant 0 : i32
    %c0_i32_0 = arith.constant 0 : i32
    %c0_i32_1 = arith.constant 0 : i32
    return %c0_i32, %c0_i32_0 : i32, i32
  }
  func.func @transform_5(%arg0: i32, %arg1: i32) -> (i32, i32) {
    %c0_i32 = arith.constant 0 : i32
    %c0_i32_0 = arith.constant 0 : i32
    %c0_i32_1 = arith.constant 0 : i32
    return %c0_i32, %c0_i32_0 : i32, i32
  }
  func.func @transform_6(%arg0: i32, %arg1: i32) -> (i32, i32) {
    %c0_i32 = arith.constant 0 : i32
    %c0_i32_0 = arith.constant 0 : i32
    return %arg0, %c0_i32 : i32, i32
  }
}

</mosaic_0001>

<llo_original>
// kernel: tpu_custom_call.1
$region0: #{tpu_custom_call.1}
  #allocation0 [shape = 'u32[]', space=smem, size = 0x4, offset = 0x4, fixed_abs, tag = 'smem constant byte address 0x4 - core index']
  #allocation1 [shape = 'u32[144,128]{1,0:T(1,128)}', space=vmem, size = 0x12000, scoped, tag = 'internal scratch']
  #allocation2 [shape = 'f32[2,32]{1,0:T(2,128)}', space=vmem, size = 0x400, scoped, tag = 'scratch operand']
  #allocation3 [shape = 'f32[1,1]{1,0:T(1,128)S(1)}', space=vmem, size = 0x200, scoped, tag = 'scoped memory for tpu_custom_call.1']
  %s0 = inlined_call_operand.hbm [shape: f32[2,8,39], index: 0, kind: input, shape index: {}]
  %s1 = inlined_call_operand.vmem [shape: f32[39,32], index: 1, kind: input, shape index: {}]
  %s2 = inlined_call_operand.vmem [shape: f32[2,32,32], index: 2, kind: input, shape index: {}]
  %s3 = inlined_call_operand.vmem [shape: f32[3,32], index: 3, kind: input, shape index: {}]
  %s4 = inlined_call_operand.vmem [shape: f32[1,32], index: 4, kind: input, shape index: {}]
  %s5 = inlined_call_operand.<no memory space> [shape: f32[1,1], index: 5, kind: input, shape index: {}]
  %s6 = inlined_call_operand.vmem [shape: f32[2,1], index: 6, kind: output, shape index: {}]
  %s7 = sld [smem:[#allocation0]]
  $region46: #{tpu_custom_call.1} parent=0
    _
  %s9 = ssub.s32 1, %s7
  %s10 = scalar_select 0, %s9, %s7
  %v11 = vstv %s5
  %12 = vst [vmem:[#allocation3] sm:$0x1] %v11
  $region1: #{tpu_custom_call.1} parent=0
    #allocation4 [shape = 'u8[8192]{0}', space=vmem, size = 0x2000, scoped, tag = 'input window, operand 0, single buffered']
    #allocation5 [shape = 's32[1]{0}', space=sflag, size = 0x4, scoped, tag = 'scoped memory for tpu_custom_call.1']
    %13 = vsyncpa [#allocation5], 0
    // Predicated region
    $region2: #{tpu_custom_call.1} parent=1 // pred_check
      _
    $region3: #{tpu_custom_call.1} parent=1 // pred_check_branch
      %15 = sbr.rel (0) target = $region5
    $region4: #{tpu_custom_call.1} parent=1 // pred_region
      %s17 = ssub.s32 256, 256
      %18 = vsyncadd [#allocation5], %s17
      %s19 = sshll.u32 [#allocation4], 4
      %s20 = int_to_ptr.vmem [resolvable:$true] %s19
      %25 = dma.hbm_to_vmem [thread:$0]  %s0, 256, %s20, [#allocation5], 128, 128, 8
    $region5: #{tpu_custom_call.1} parent=1 // pred_fallthru
      _
    // Predicated region
    $region6: #{tpu_custom_call.1} parent=1 // pred_check
      _
    $region7: #{tpu_custom_call.1} parent=1 // pred_check_branch
      %27 = sbr.rel (0) target = $region9
    $region8: #{tpu_custom_call.1} parent=1 // pred_region
      _
    $region9: #{tpu_custom_call.1} parent=1 // pred_fallthru
      _
    // Predicated region
    $region10: #{tpu_custom_call.1} parent=1 // pred_check
      _
    $region11: #{tpu_custom_call.1} parent=1 // pred_check_branch
      %29 = sbr.rel (0) target = $region13
    $region12: #{tpu_custom_call.1} parent=1 // pred_region
      _
    $region13: #{tpu_custom_call.1} parent=1 // pred_fallthru
      _
    // Predicated region
    $region14: #{tpu_custom_call.1} parent=1 // pred_check
      _
    $region15: #{tpu_custom_call.1} parent=1 // pred_check_branch
      %31 = sbr.rel (0) target = $region17
    $region16: #{tpu_custom_call.1} parent=1 // pred_region
      _
    $region17: #{tpu_custom_call.1} parent=1 // pred_fallthru
      _
    // Predicated region
    $region18: #{tpu_custom_call.1} parent=1 // pred_check
      _
    $region19: #{tpu_custom_call.1} parent=1 // pred_check_branch
      %33 = sbr.rel (0) target = $region21
    $region20: #{tpu_custom_call.1} parent=1 // pred_region
      _
    $region21: #{tpu_custom_call.1} parent=1 // pred_fallthru
      _
    // Predicated region
    $region22: #{tpu_custom_call.1} parent=1 // pred_check
      _
    $region23: #{tpu_custom_call.1} parent=1 // pred_check_branch
      %35 = sbr.rel (0) target = $region25
    $region24: #{tpu_custom_call.1} parent=1 // pred_region
      _
    $region25: #{tpu_custom_call.1} parent=1 // pred_fallthru
      _
    // Predicated region
    $region26: #{tpu_custom_call.1} parent=1 // pred_check
      _
    $region27: #{tpu_custom_call.1} parent=1 // pred_check_branch
      %37 = sbr.rel (0) target = $region29
    $region28: #{tpu_custom_call.1} parent=1 // pred_region
      %38 = dma.done [#allocation5], 256
    $region29: #{tpu_custom_call.1} parent=1 // pred_fallthru
      _
    %p39 = scmp.eq.s32.totalorder 0, 0
    // Predicated region
    $region30: #{tpu_custom_call.1} parent=1 // pred_check
      %p40 = pneg %p39
    $region31: #{tpu_custom_call.1} parent=1 // pred_check_branch
      %42 = sbr.rel (%p40) target = $region33
    $region32: #{tpu_custom_call.1} parent=1 // pred_region
      %vm43 = vcmask 254976
      %44 = vst.msk [vmem:[#allocation2] sm:$0x3] %vm43, 0.0
    $region33: #{tpu_custom_call.1} parent=1 // pred_fallthru
      _
    %v45 = vld [vmem:[#allocation4] sm:$0xff]
    %v46 = vld [vmem:[#allocation4 + $0x8] sm:$0xff]
    %v47 = vld [vmem:[%s3] sm:$0x7]
    %v48 = vld [vmem:[%s1] sm:$0xff]
    %v49 = vld [vmem:[%s1 + $0x8] sm:$0xff]
    %v50 = vld [vmem:[%s1 + $0x10] sm:$0xff]
    %v51 = vld [vmem:[%s1 + $0x18] sm:$0xff]
    %v52 = vld [vmem:[%s1 + $0x20] sm:$0x7f]
    %v53 = vlaneseq
    %v54 = vshrl.u32 %v53, 7
    %v55 = vsub.s32 0, %v54
    %v56 = vrot.slane %v47, %v55
    %vm57 = vcmask 318464
    %v59 = vsel %vm57, %v45, 0
    %v62 = vsel %vm57, %v46, 0
    %vm64 = vcmask 1046528
    %v66 = vsel %vm64, %v52, 0
    %68 = vmatprep.subr.mxu0 0.0
    %69 = vmatpush1.msra.mxu0 0.0
    %70 = vmatprep.subr.mxu0 0.0
    %71 = vmatpush1.msra.mxu0 0.0
    %72 = vmatprep.subr.mxu0 0.0
    %73 = vmatpush1.msra.mxu0 0.0
    %74 = vmatprep.subr.mxu0 0.0
    %75 = vmatpush1.msra.mxu0 0.0
    %76 = vmatprep.subr.mxu0 0.0
    %77 = vmatpush1.msra.mxu0 0.0
    %78 = vmatprep.subr.mxu0 0.0
    %79 = vmatpush1.msra.mxu0 0.0
    %80 = vmatprep.subr.mxu0 0.0
    %81 = vmatpush1.msra.mxu0 0.0
    %82 = vmatprep.subr.mxu0 0.0
    %83 = vmatpush1.msra.mxu0 0.0
    %84 = vmatprep.subr.mxu0 0.0
    %85 = vmatpush1.msra.mxu0 0.0
    %86 = vmatprep.subr.mxu0 0.0
    %87 = vmatpush1.msra.mxu0 0.0
    %88 = vmatprep.subr.mxu0 0.0
    %89 = vmatpush1.msra.mxu0 0.0
    %90 = vmatprep.subr.mxu0 0.0
    %91 = vmatpush1.msra.mxu0 %v66
    %92 = vmatprep.subr.mxu0 0.0
    %93 = vmatpush1.msra.mxu0 %v51
    %94 = vmatprep.subr.mxu0 0.0
    %95 = vmatpush1.msra.mxu0 %v50
    %96 = vmatprep.subr.mxu0 0.0
    %97 = vmatpush1.msra.mxu0 %v49
    %98 = vmatprep.subr.mxu0 0.0
    %99 = vmatpush1.msra.mxu0 %v48
    %100 = vmatprep.subr.mxu0 0.0
    %101 = vmatpush2.msra.mxu0 0.0
    %102 = vmatprep.subr.mxu0 0.0
    %103 = vmatpush2.msra.mxu0 0.0
    %104 = vmatprep.subr.mxu0 0.0
    %105 = vmatpush2.msra.mxu0 0.0
    %106 = vmatprep.subr.mxu0 0.0
    %107 = vmatpush2.msra.mxu0 0.0
    %108 = vmatprep.subr.mxu0 0.0
    %109 = vmatpush2.msra.mxu0 0.0
    %110 = vmatprep.subr.mxu0 0.0
    %111 = vmatpush2.msra.mxu0 0.0
    %112 = vmatprep.subr.mxu0 0.0
    %113 = vmatpush2.msra.mxu0 0.0
    %114 = vmatprep.subr.mxu0 0.0
    %115 = vmatpush2.msra.mxu0 0.0
    %116 = vmatprep.subr.mxu0 0.0
    %117 = vmatpush2.msra.mxu0 0.0
    %118 = vmatprep.subr.mxu0 0.0
    %119 = vmatpush2.msra.mxu0 0.0
    %120 = vmatprep.subr.mxu0 0.0
    %121 = vmatpush2.msra.mxu0 0.0
    %122 = vmatprep.subr.mxu0 0.0
    %123 = vmatpush2.msra.mxu0 0.0
    %124 = vmatprep.subr.mxu0 0.0
    %125 = vmatpush2.msra.mxu0 0.0
    %126 = vmatprep.subr.mxu0 0.0
    %127 = vmatpush2.msra.mxu0 0.0
    %128 = vmatprep.subr.mxu0 0.0
    %129 = vmatpush2.msra.mxu0 0.0
    %130 = vmatprep.subr.mxu0 0.0
    %131 = vmatpush2.msra.mxu0 0.0
    %132 = vmatprep.mubr.f32.mxu0 0.0
    %133 = vmatmul.mubr.f32.gmra.mxu0 %v59
    %v134 = vpop.f32.mrf.mxu0
    %v135 = vadd.f32 %v56, %v134
    %v136 = vpop.f32.mrf.mxu0
    %137 = vmatprep.mubr.f32.mxu0 0.0
    %138 = vmatmul.mubr.f32.gmra.mxu0 %v62
    %v139 = vpop.f32.mrf.mxu0
    %v140 = vadd.f32 %v56, %v139
    %v141 = vpop.f32.mrf.mxu0
    %142 = vdwg.mxu0
    %v143 = vmax.f32 %v135, 0.0
    %v144 = vmax.f32 %v140, 0.0
    %v145 = vld [vmem:[%s2] sm:$0xff]
    %v146 = vld [vmem:[%s2 + $0x8] sm:$0xff]
    %v147 = vld [vmem:[%s2 + $0x10] sm:$0xff]
    %v148 = vld [vmem:[%s2 + $0x18] sm:$0xff]
    %v149 = vlaneseq
    %v150 = vshrl.u32 %v149, 7
    %v151 = vsub.s32 1, %v150
    %v152 = vrot.slane %v47, %v151
    %vm153 = vcmask 261120
    %v155 = vsel %vm153, %v143, 0
    %v158 = vsel %vm153, %v144, 0
    %160 = vmatprep.subr.mxu0 0.0
    %161 = vmatpush1.msra.mxu0 0.0
    %162 = vmatprep.subr.mxu0 0.0
    %163 = vmatpush1.msra.mxu0 0.0
    %164 = vmatprep.subr.mxu0 0.0
    %165 = vmatpush1.msra.mxu0 0.0
    %166 = vmatprep.subr.mxu0 0.0
    %167 = vmatpush1.msra.mxu0 0.0
    %168 = vmatprep.subr.mxu0 0.0
    %169 = vmatpush1.msra.mxu0 0.0
    %170 = vmatprep.subr.mxu0 0.0
    %171 = vmatpush1.msra.mxu0 0.0
    %172 = vmatprep.subr.mxu0 0.0
    %173 = vmatpush1.msra.mxu0 0.0
    %174 = vmatprep.subr.mxu0 0.0
    %175 = vmatpush1.msra.mxu0 0.0
    %176 = vmatprep.subr.mxu0 0.0
    %177 = vmatpush1.msra.mxu0 0.0
    %178 = vmatprep.subr.mxu0 0.0
    %179 = vmatpush1.msra.mxu0 0.0
    %180 = vmatprep.subr.mxu0 0.0
    %181 = vmatpush1.msra.mxu0 0.0
    %182 = vmatprep.subr.mxu0 0.0
    %183 = vmatpush1.msra.mxu0 0.0
    %184 = vmatprep.subr.mxu0 0.0
    %185 = vmatpush1.msra.mxu0 %v148
    %186 = vmatprep.subr.mxu0 0.0
    %187 = vmatpush1.msra.mxu0 %v147
    %188 = vmatprep.subr.mxu0 0.0
    %189 = vmatpush1.msra.mxu0 %v146
    %190 = vmatprep.subr.mxu0 0.0
    %191 = vmatpush1.msra.mxu0 %v145
    %192 = vmatprep.subr.mxu0 0.0
    %193 = vmatpush2.msra.mxu0 0.0
    %194 = vmatprep.subr.mxu0 0.0
    %195 = vmatpush2.msra.mxu0 0.0
    %196 = vmatprep.subr.mxu0 0.0
    %197 = vmatpush2.msra.mxu0 0.0
    %198 = vmatprep.subr.mxu0 0.0
    %199 = vmatpush2.msra.mxu0 0.0
    %200 = vmatprep.subr.mxu0 0.0
    %201 = vmatpush2.msra.mxu0 0.0
    %202 = vmatprep.subr.mxu0 0.0
    %203 = vmatpush2.msra.mxu0 0.0
    %204 = vmatprep.subr.mxu0 0.0
    %205 = vmatpush2.msra.mxu0 0.0
    %206 = vmatprep.subr.mxu0 0.0
    %207 = vmatpush2.msra.mxu0 0.0
    %208 = vmatprep.subr.mxu0 0.0
    %209 = vmatpush2.msra.mxu0 0.0
    %210 = vmatprep.subr.mxu0 0.0
    %211 = vmatpush2.msra.mxu0 0.0
    %212 = vmatprep.subr.mxu0 0.0
    %213 = vmatpush2.msra.mxu0 0.0
    %214 = vmatprep.subr.mxu0 0.0
    %215 = vmatpush2.msra.mxu0 0.0
    %216 = vmatprep.subr.mxu0 0.0
    %217 = vmatpush2.msra.mxu0 0.0
    %218 = vmatprep.subr.mxu0 0.0
    %219 = vmatpush2.msra.mxu0 0.0
    %220 = vmatprep.subr.mxu0 0.0
    %221 = vmatpush2.msra.mxu0 0.0
    %222 = vmatprep.subr.mxu0 0.0
    %223 = vmatpush2.msra.mxu0 0.0
    %224 = vmatprep.mubr.f32.mxu0 0.0
    %225 = vmatmul.mubr.f32.gmra.mxu0 %v155
    %v226 = vpop.f32.mrf.mxu0
    %v227 = vadd.f32 %v152, %v226
    %v228 = vpop.f32.mrf.mxu0
    %229 = vmatprep.mubr.f32.mxu0 0.0
    %230 = vmatmul.mubr.f32.gmra.mxu0 %v158
    %v231 = vpop.f32.mrf.mxu0
    %v232 = vadd.f32 %v152, %v231
    %v233 = vpop.f32.mrf.mxu0
    %234 = vdwg.mxu0
    %v235 = vmax.f32 %v227, 0.0
    %v236 = vmax.f32 %v232, 0.0
    %s237 = scalar_lea.vmem %s2, 32
    %v238 = vld [vmem:[%s237] sm:$0xff]
    %v239 = vld [vmem:[%s237 + $0x8] sm:$0xff]
    %v240 = vld [vmem:[%s237 + $0x10] sm:$0xff]
    %v241 = vld [vmem:[%s237 + $0x18] sm:$0xff]
    %v242 = vlaneseq
    %v243 = vshrl.u32 %v242, 7
    %v244 = vsub.s32 2, %v243
    %v245 = vrot.slane %v47, %v244
    %v247 = vsel %vm153, %v235, 0
    %v250 = vsel %vm153, %v236, 0
    %252 = vmatprep.subr.mxu0 0.0
    %253 = vmatpush1.msra.mxu0 0.0
    %254 = vmatprep.subr.mxu0 0.0
    %255 = vmatpush1.msra.mxu0 0.0
    %256 = vmatprep.subr.mxu0 0.0
    %257 = vmatpush1.msra.mxu0 0.0
    %258 = vmatprep.subr.mxu0 0.0
    %259 = vmatpush1.msra.mxu0 0.0
    %260 = vmatprep.subr.mxu0 0.0
    %261 = vmatpush1.msra.mxu0 0.0
    %262 = vmatprep.subr.mxu0 0.0
    %263 = vmatpush1.msra.mxu0 0.0
    %264 = vmatprep.subr.mxu0 0.0
    %265 = vmatpush1.msra.mxu0 0.0
    %266 = vmatprep.subr.mxu0 0.0
    %267 = vmatpush1.msra.mxu0 0.0
    %268 = vmatprep.subr.mxu0 0.0
    %269 = vmatpush1.msra.mxu0 0.0
    %270 = vmatprep.subr.mxu0 0.0
    %271 = vmatpush1.msra.mxu0 0.0
    %272 = vmatprep.subr.mxu0 0.0
    %273 = vmatpush1.msra.mxu0 0.0
    %274 = vmatprep.subr.mxu0 0.0
    %275 = vmatpush1.msra.mxu0 0.0
    %276 = vmatprep.subr.mxu0 0.0
    %277 = vmatpush1.msra.mxu0 %v241
    %278 = vmatprep.subr.mxu0 0.0
    %279 = vmatpush1.msra.mxu0 %v240
    %280 = vmatprep.subr.mxu0 0.0
    %281 = vmatpush1.msra.mxu0 %v239
    %282 = vmatprep.subr.mxu0 0.0
    %283 = vmatpush1.msra.mxu0 %v238
    %284 = vmatprep.subr.mxu0 0.0
    %285 = vmatpush2.msra.mxu0 0.0
    %286 = vmatprep.subr.mxu0 0.0
    %287 = vmatpush2.msra.mxu0 0.0
    %288 = vmatprep.subr.mxu0 0.0
    %289 = vmatpush2.msra.mxu0 0.0
    %290 = vmatprep.subr.mxu0 0.0
    %291 = vmatpush2.msra.mxu0 0.0
    %292 = vmatprep.subr.mxu0 0.0
    %293 = vmatpush2.msra.mxu0 0.0
    %294 = vmatprep.subr.mxu0 0.0
    %295 = vmatpush2.msra.mxu0 0.0
    %296 = vmatprep.subr.mxu0 0.0
    %297 = vmatpush2.msra.mxu0 0.0
    %298 = vmatprep.subr.mxu0 0.0
    %299 = vmatpush2.msra.mxu0 0.0
    %300 = vmatprep.subr.mxu0 0.0
    %301 = vmatpush2.msra.mxu0 0.0
    %302 = vmatprep.subr.mxu0 0.0
    %303 = vmatpush2.msra.mxu0 0.0
    %304 = vmatprep.subr.mxu0 0.0
    %305 = vmatpush2.msra.mxu0 0.0
    %306 = vmatprep.subr.mxu0 0.0
    %307 = vmatpush2.msra.mxu0 0.0
    %308 = vmatprep.subr.mxu0 0.0
    %309 = vmatpush2.msra.mxu0 0.0
    %310 = vmatprep.subr.mxu0 0.0
    %311 = vmatpush2.msra.mxu0 0.0
    %312 = vmatprep.subr.mxu0 0.0
    %313 = vmatpush2.msra.mxu0 0.0
    %314 = vmatprep.subr.mxu0 0.0
    %315 = vmatpush2.msra.mxu0 0.0
    %316 = vmatprep.mubr.f32.mxu0 0.0
    %317 = vmatmul.mubr.f32.gmra.mxu0 %v247
    %v318 = vpop.f32.mrf.mxu0
    %v319 = vadd.f32 %v245, %v318
    %v320 = vpop.f32.mrf.mxu0
    %321 = vmatprep.mubr.f32.mxu0 0.0
    %322 = vmatmul.mubr.f32.gmra.mxu0 %v250
    %v323 = vpop.f32.mrf.mxu0
    %v324 = vadd.f32 %v245, %v323
    %v325 = vpop.f32.mrf.mxu0
    %326 = vdwg.mxu0
    %v327 = vmax.f32 %v319, 0.0
    %v328 = vmax.f32 %v324, 0.0
    %v329 = vld [vmem:[#allocation2] sm:$0x3]
    %v330 = vsel %vm153, %v327, 0.0
    %v331 = vrot.slane %v330, 4
    %v332 = vadd.f32 %v330, %v331
    %v333 = vrot.slane %v332, 2
    %v334 = vadd.f32 %v332, %v333
    %v335 = vrot.slane %v334, 1
    %v336 = vadd.f32 %v334, %v335
    %v337 = vsel %vm153, %v328, 0.0
    %v338 = vrot.slane %v337, 4
    %v339 = vadd.f32 %v337, %v338
    %v340 = vrot.slane %v339, 2
    %v341 = vadd.f32 %v339, %v340
    %v342 = vrot.slane %v341, 1
    %v343 = vadd.f32 %v341, %v342
    %vm346 = vcmask 1041409
    %v347 = vsel %vm346, %v343, %v336
    %v349 = vadd.f32 %v329, %v347
    %vm350 = vcmask 254976
    %351 = vst.msk [vmem:[#allocation2] sm:$0x3] %vm350, %v349
    // Predicated region
    $region34: #{tpu_custom_call.1} parent=1 // pred_check
      %p352 = pneg %p39
    $region35: #{tpu_custom_call.1} parent=1 // pred_check_branch
      %354 = sbr.rel (%p352) target = $region37
    $region36: #{tpu_custom_call.1} parent=1 // pred_region
      %v355 = vld [vmem:[#allocation2] sm:$0x3]
      %v356 = vmul.f32 %v355, 0.125
      %v357 = vld [vmem:[%s4] sm:$0x1]
      %v359 = vlaneseq
      %v360 = vshrl.u32 %v359, 7
      %v361 = vsub.s32 0, %v360
      %v362 = vrot.slane %v357, %v361
      %v364 = vmul.f32 %v356, %v362
      %v365 = vsel %vm350, %v364, 0.0
      %366 = vadd.xlane.f32.xlu0 %v365
      %v367 = vpop.xlane.xlu0 %366
      %v368 = vld [vmem:[#allocation3] sm:$0x1]
      %v370 = vlaneseq
      %v371 = vshrl.u32 %v370, 7
      %v372 = vsub.s32 0, %v371
      %v373 = vrot.slane %v368, %v372
      %v375 = vadd.f32 %v367, %v373
      %v376 = vxor.u32 %v375, 2147483648
      %v377 = vmul.f32 %v376, 1.442695
      %v378 = vpow.pop %v377
      %v379 = vadd.f32 %v378, 1.0
      %v380 = vrcp.pop %v379
      %v381 = vmul.f32 1.0, %v380
      %vm382 = vcmask 1024
      %383 = vst.msk [vmem:[%s6] sm:$0x3] %vm382, %v381
    $region37: #{tpu_custom_call.1} parent=1 // pred_fallthru
      _
    // Predicated region
    $region38: #{tpu_custom_call.1} parent=1 // pred_check
      _
    $region39: #{tpu_custom_call.1} parent=1 // pred_check_branch
      %385 = sbr.rel (0) target = $region41
    $region40: #{tpu_custom_call.1} parent=1 // pred_region
      _
    $region41: #{tpu_custom_call.1} parent=1 // pred_fallthru
      _
    // Predicated region
    $region42: #{tpu_custom_call.1} parent=1 // pred_check
      _
    $region43: #{tpu_custom_call.1} parent=1 // pred_check_branch
      %387 = sbr.rel (0) target = $region45
    $region44: #{tpu_custom_call.1} parent=1 // pred_region
      _
    $region45: #{tpu_custom_call.1} parent=1 // pred_fallthru
      _
    %388 = vsyncpa [#allocation5], 1

</llo_original>
